<compile_context>
chip_gen: v5e
topology: v5e:2x2
jax: 0.10.0
libtpu: 0.0.40
codegen_flags: <defaults>
</compile_context>

<pallas_src>
import functools

import numpy as np
import jax
import jax.numpy as jnp
from jax import lax
from jax.experimental import pallas as pl
from jax.experimental.pallas import tpu as pltpu


def _gaussian_1d(ksize: int) -> np.ndarray:
    """1-D factor of the module's blur kernel.

    GaussianBlurLayer._init_kernel() == scipy.ndimage.gaussian_filter(delta_2d, sigma)
    (truncate=4.0, mode='reflect'), which is separable on a delta input:
    K2d = outer(g, g) with g the same 1-D filtering applied to a length-ksize delta."""
    sigma = 0.3 * ((ksize - 1) * 0.5 - 1) + 0.8
    if ksize == 1:
        return np.ones((1,), dtype=np.float64)
    lw = int(4.0 * sigma + 0.5)
    t = np.arange(-lw, lw + 1, dtype=np.float64)
    w = np.exp(-0.5 * (t / sigma) ** 2)
    w /= w.sum()
    delta = np.zeros((ksize,), dtype=np.float64)
    delta[ksize // 2] = 1.0
    padded = np.pad(delta, lw, mode="symmetric")   # scipy 'reflect' == numpy 'symmetric'
    return np.convolve(padded, w, mode="valid")    # length == ksize


def _blur_matrix(n: int, g: np.ndarray) -> np.ndarray:
    """Banded (n x n) matrix A with (A @ v) == 1-D Gaussian blur of v with
    ReflectionPad-style boundaries (edge not repeated), folding the reflect pad
    directly into the weights."""
    k = g.shape[0]
    p = k // 2
    assert p < n, "reflection padding requires pad < dim (like nn.ReflectionPad2d)"
    A = np.zeros((n, n), dtype=np.float64)
    for i in range(n):
        for t in range(k):
            m = i + t - p
            if m < 0:
                m = -m                         # index -j reflects to +j
            elif m > n - 1:
                m = 2 * (n - 1) - m            # index n-1+j reflects to n-1-j
            A[i, m] += g[t]
    return A


def _flawmap_kernel(x_ref, ah_ref, awt_ref, o_ref, *, clip):
    """x_ref: (B, H, W) samples; ah_ref: (H, H); awt_ref: (W, W) == A_w.T; o_ref: (B, H, W)."""
    ah = ah_ref[...]
    awt = awt_ref[...]
    for b in range(x_ref.shape[0]):            # small static sample loop, fully unrolled
        x = jnp.maximum(x_ref[b], 0.0)         # flawmap.mul_((flawmap >= 0).float())
        # Reflect-padded separable Gaussian blur as two MXU matmuls.
        z = jnp.dot(x, awt, preferred_element_type=jnp.float32,
                    precision=lax.Precision.HIGHEST)        # horizontal (W) pass
        z = jnp.dot(ah, z, preferred_element_type=jnp.float32,
                    precision=lax.Precision.HIGHEST)        # vertical (H) pass
        fmax = jnp.max(z)                                   # per-sample max over (C=1,H,W)
        fmin = jnp.min(z)                                   # per-sample min
        keep = (fmax > clip).astype(jnp.float32)            # (max_matrix > thr).float()
        inv = 1.0 / (fmax - fmin + 1e-9)                    # scalar reciprocal, broadcast-mul
        o_ref[b] = (z * keep - fmin) * inv


def flawmap_handler(flawmap, *, im_size, clip_threshold=0.1, samples_per_block=None):
    """Pallas implementation of FlawmapHandler.forward. flawmap: (N, 1, H, W) float."""
    N, C, H, W = flawmap.shape
    assert C == 1, "FlawmapHandler uses GaussianBlurLayer(1, ...) -> single channel"

    ksize = im_size // 16
    ksize = ksize + 1 if ksize % 2 == 0 else ksize
    g = _gaussian_1d(ksize)
    a_h = jnp.asarray(_blur_matrix(H, g), dtype=jnp.float32)
    a_wt = jnp.asarray(_blur_matrix(W, g).T, dtype=jnp.float32)

    x = flawmap.reshape(N, H, W).astype(jnp.float32)

    # Samples per grid step: target ~2 MiB input blocks, cap the in-kernel unroll,
    # keep >= 2 grid steps when possible so the batch axis can shard across cores.
    if samples_per_block is None:
        per_sample_bytes = H * W * 4
        B = max(1, min(8, (2 * 1024 * 1024) // per_sample_bytes, N))
        if N > 1:
            B = min(B, (N + 1) // 2)
    else:
        B = max(1, min(samples_per_block, N))
    G = pl.cdiv(N, B)
    n_pad = G * B
    if n_pad != N:
        x = jnp.pad(x, ((0, n_pad - N), (0, 0), (0, 0)))   # zero samples; sliced off below

    kernel = functools.partial(_flawmap_kernel, clip=float(clip_threshold))
    # TODO(synk): for W < 128 a lane-dense (N, H*W) output layout would avoid masked
    # partial stores; kept (B, H, W) here for simplicity.
    out = pl.pallas_call(
        kernel,
        out_shape=jax.ShapeDtypeStruct((n_pad, H, W), jnp.float32),
        grid=(G,),
        in_specs=[
            pl.BlockSpec((B, H, W), lambda i: (i, 0, 0)),   # tile-aligned: full H, W per block
            pl.BlockSpec((H, H), lambda i: (0, 0)),         # resident blur matrices
            pl.BlockSpec((W, W), lambda i: (0, 0)),
        ],
        out_specs=pl.BlockSpec((B, H, W), lambda i: (i, 0, 0)),
        compiler_params=pltpu.CompilerParams(dimension_semantics=("parallel",)),
    )(x, a_h, a_wt)
    return out[:N].reshape(N, 1, H, W)


# ----------------------------- reference (pure JAX) -----------------------------

def _gaussian_blur_weights_2d(ksize: int) -> np.ndarray:
    """Full 2-D Gaussian kernel exactly as the module's _init_kernel() (reference path)."""
    sigma = 0.3 * ((ksize - 1) * 0.5 - 1) + 0.8
    if ksize == 1:
        return np.ones((1, 1), dtype=np.float32)
    lw = int(4.0 * sigma + 0.5)
    t = np.arange(-lw, lw + 1, dtype=np.float64)
    w1d = np.exp(-0.5 * (t / sigma) ** 2)
    w1d /= w1d.sum()
    out = np.zeros((ksize, ksize), dtype=np.float64)
    c = ksize // 2
    out[c, c] = 1.0
    for axis in (0, 1):
        pad = [(lw, lw) if a == axis else (0, 0) for a in range(2)]
        padded = np.pad(out, pad, mode="symmetric")
        out = np.apply_along_axis(lambda m: np.convolve(m, w1d, mode="valid"), axis, padded)
    return out.astype(np.float32)


def _reference(flawmap, *, im_size, clip_threshold=0.1):
    """Independent path: 2-D kernel + jnp.pad(reflect) + lax.conv, for a correctness check."""
    N, C, H, W = flawmap.shape
    ksize = im_size // 16
    ksize = ksize + 1 if ksize % 2 == 0 else ksize
    kw = jnp.asarray(_gaussian_blur_weights_2d(ksize))[None, None]  # OIHW (1,1,k,k)
    p = ksize // 2

    x = flawmap.astype(jnp.float32)
    x = x * (x >= 0).astype(jnp.float32)
    if p > 0:
        x = jnp.pad(x, ((0, 0), (0, 0), (p, p), (p, p)), mode="reflect")
    blur = lax.conv_general_dilated(
        x, kw, window_strides=(1, 1), padding="VALID",
        dimension_numbers=("NCHW", "OIHW", "NCHW"),
        precision=lax.Precision.HIGHEST)
    fmax = blur.max(axis=(1, 2, 3), keepdims=True)
    fmin = blur.min(axis=(1, 2, 3), keepdims=True)
    blur = blur * (fmax > clip_threshold).astype(jnp.float32)
    return (blur - fmin) / (fmax - fmin + 1e-9)


if __name__ == "__main__":
    key = jax.random.PRNGKey(0)

    # Case 1: im_size=32 -> blur ksize 3; N=2 -> one sample per grid step (2 grid steps).
    IM_SIZE = 32
    N = 2
    k1, k2 = jax.random.split(key)
    flawmap = jax.random.normal(k1, (N, 1, IM_SIZE, IM_SIZE), dtype=jnp.float32)
    out = jax.block_until_ready(flawmap_handler(flawmap, im_size=IM_SIZE))
    ref = _reference(flawmap, im_size=IM_SIZE)
    np.testing.assert_allclose(np.asarray(out), np.asarray(ref), rtol=1e-4, atol=1e-4)

    # Case 2: im_size=64 -> blur ksize 5; N=4 -> 2 samples per grid step (batched blocks).
    IM_SIZE2 = 64
    N2 = 4
    flawmap2 = jax.random.normal(k2, (N2, 1, IM_SIZE2, IM_SIZE2), dtype=jnp.float32)
    out2 = jax.block_until_ready(flawmap_handler(flawmap2, im_size=IM_SIZE2))
    ref2 = _reference(flawmap2, im_size=IM_SIZE2)
    np.testing.assert_allclose(np.asarray(out2), np.asarray(ref2), rtol=1e-4, atol=1e-4)

    print("KERNEL_OK")
</pallas_src>

<mosaic_0001>
module attributes {stable_mosaic.version = 11 : i64} {
  func.func @_flawmap_kernel(%arg0: i32, %arg1: memref<1x32x32xf32, #tpu.memory_space<vmem>>, %arg2: memref<32x32xf32, #tpu.memory_space<vmem>>, %arg3: memref<32x32xf32, #tpu.memory_space<vmem>>, %arg4: memref<1x32x32xf32, #tpu.memory_space<vmem>>) attributes {dimension_semantics = [#tpu.dimension_semantics<parallel>], iteration_bounds = array<i64: 2>, scalar_prefetch = 0 : i64, scratch_operands = 0 : i64, tpu.core_type = #tpu.core_type<tc>, window_params = [{transform_indices = @transform_0, window_bounds = array<i64: 1, 32, 32>}, {pipeline_mode = #tpu.pipeline_mode<synchronous>, transform_indices = @transform_1, window_bounds = array<i64: 32, 32>}, {pipeline_mode = #tpu.pipeline_mode<synchronous>, transform_indices = @transform_2, window_bounds = array<i64: 32, 32>}, {transform_indices = @transform_3, window_bounds = array<i64: 1, 32, 32>}]} {
    %c0 = arith.constant 0 : index
    %c0_0 = arith.constant 0 : index
    %0 = vector.load %arg2[%c0, %c0_0] : memref<32x32xf32, #tpu.memory_space<vmem>>, vector<32x32xf32>
    %c0_1 = arith.constant 0 : index
    %c0_2 = arith.constant 0 : index
    %1 = vector.load %arg3[%c0_1, %c0_2] : memref<32x32xf32, #tpu.memory_space<vmem>>, vector<32x32xf32>
    %c0_3 = arith.constant 0 : index
    %c0_4 = arith.constant 0 : index
    %c0_5 = arith.constant 0 : index
    %2 = vector.load %arg1[%c0_3, %c0_4, %c0_5] : memref<1x32x32xf32, #tpu.memory_space<vmem>>, vector<1x32x32xf32>
    %3 = vector.shape_cast %2 : vector<1x32x32xf32> to vector<32x32xf32>
    %cst = arith.constant 0.000000e+00 : f32
    %4 = vector.broadcast %cst : f32 to vector<32x32xf32>
    %5 = arith.maximumf %3, %4 : vector<32x32xf32>
    %cst_6 = arith.constant dense<0.000000e+00> : vector<32x32xf32>
    %6 = tpu.matmul %5, %1, %cst_6 {dimension_numbers = #tpu.dot_dimension_numbers<[1], [0], [0], [1], [0, 0, 1, 1], [], []>, precision = #tpu.contract_precision<fp32>} : vector<32x32xf32>, vector<32x32xf32>, vector<32x32xf32> -> vector<32x32xf32>
    %cst_7 = arith.constant dense<0.000000e+00> : vector<32x32xf32>
    %7 = tpu.matmul %0, %6, %cst_7 {dimension_numbers = #tpu.dot_dimension_numbers<[1], [0], [0], [1], [0, 0, 1, 1], [], []>, precision = #tpu.contract_precision<fp32>} : vector<32x32xf32>, vector<32x32xf32>, vector<32x32xf32> -> vector<32x32xf32>
    %8 = vector.shape_cast %7 : vector<32x32xf32> to vector<1x32x32xf32>
    %cst_8 = arith.constant dense<0xFF800000> : vector<1xf32>
    %9 = vector.multi_reduction <maximumf>, %8, %cst_8 [1, 2] : vector<1x32x32xf32> to vector<1xf32>
    %10 = vector.shape_cast %9 : vector<1xf32> to vector<1x1x1xf32>
    %11 = vector.extract %10[0, 0, 0] : f32 from vector<1x1x1xf32>
    %12 = vector.shape_cast %7 : vector<32x32xf32> to vector<1x32x32xf32>
    %cst_9 = arith.constant dense<0x7F800000> : vector<1xf32>
    %13 = vector.multi_reduction <minimumf>, %12, %cst_9 [1, 2] : vector<1x32x32xf32> to vector<1xf32>
    %14 = vector.shape_cast %13 : vector<1xf32> to vector<1x1x1xf32>
    %15 = vector.extract %14[0, 0, 0] : f32 from vector<1x1x1xf32>
    %cst_10 = arith.constant 1.000000e-01 : f32
    %16 = arith.cmpf ogt, %11, %cst_10 : f32
    %17 = arith.extui %16 : i1 to i32
    %18 = arith.sitofp %17 : i32 to f32
    %19 = arith.subf %11, %15 : f32
    %cst_11 = arith.constant 9.99999971E-10 : f32
    %20 = arith.addf %19, %cst_11 : f32
    %cst_12 = arith.constant 1.000000e+00 : f32
    %21 = arith.divf %cst_12, %20 : f32
    %22 = vector.broadcast %18 : f32 to vector<32x32xf32>
    %23 = arith.mulf %7, %22 : vector<32x32xf32>
    %24 = vector.broadcast %15 : f32 to vector<32x32xf32>
    %25 = arith.subf %23, %24 : vector<32x32xf32>
    %26 = vector.broadcast %21 : f32 to vector<32x32xf32>
    %27 = arith.mulf %25, %26 : vector<32x32xf32>
    %c0_13 = arith.constant 0 : index
    %c0_14 = arith.constant 0 : index
    %c0_15 = arith.constant 0 : index
    %28 = vector.load %arg4[%c0_13, %c0_14, %c0_15] : memref<1x32x32xf32, #tpu.memory_space<vmem>>, vector<1x32x32xf32>
    %29 = vector.shape_cast %28 : vector<1x32x32xf32> to vector<32x32xf32>
    %30 = vector.shape_cast %27 : vector<32x32xf32> to vector<1x32x32xf32>
    tpu.vector_store %arg4[%c0_13, %c0_14, %c0_15], %30 {strides = array<i32>} : memref<1x32x32xf32, #tpu.memory_space<vmem>>, vector<1x32x32xf32>,
    return
  }
  func.func @transform_0(%arg0: i32) -> (i32, i32, i32) {
    %c0_i32 = arith.constant 0 : i32
    %c0_i32_0 = arith.constant 0 : i32
    %c0_i32_1 = arith.constant 0 : i32
    return %arg0, %c0_i32, %c0_i32_0 : i32, i32, i32
  }
  func.func @transform_1(%arg0: i32) -> (i32, i32) {
    %c0_i32 = arith.constant 0 : i32
    %c0_i32_0 = arith.constant 0 : i32
    %c0_i32_1 = arith.constant 0 : i32
    return %c0_i32, %c0_i32_0 : i32, i32
  }
  func.func @transform_2(%arg0: i32) -> (i32, i32) {
    %c0_i32 = arith.constant 0 : i32
    %c0_i32_0 = arith.constant 0 : i32
    %c0_i32_1 = arith.constant 0 : i32
    return %c0_i32, %c0_i32_0 : i32, i32
  }
  func.func @transform_3(%arg0: i32) -> (i32, i32, i32) {
    %c0_i32 = arith.constant 0 : i32
    %c0_i32_0 = arith.constant 0 : i32
    %c0_i32_1 = arith.constant 0 : i32
    return %arg0, %c0_i32, %c0_i32_0 : i32, i32, i32
  }
}

</mosaic_0001>

<llo_original>
// kernel: tpu_custom_call.1
$region0: #{tpu_custom_call.1}
  #allocation0 [shape = 'u32[]', space=smem, size = 0x4, offset = 0x4, fixed_abs, tag = 'smem constant byte address 0x4 - core index']
  #allocation1 [shape = 'u32[72,128]{1,0:T(1,128)}', space=vmem, size = 0x9000, scoped, tag = 'internal scratch']
  %s0 = inlined_call_operand.hbm [shape: f32[2,32,32], index: 0, kind: input, shape index: {}]
  %s1 = inlined_call_operand.hbm [shape: f32[32,32], index: 1, kind: input, shape index: {}]
  %s2 = inlined_call_operand.hbm [shape: f32[32,32], index: 2, kind: input, shape index: {}]
  %s3 = inlined_call_operand.hbm [shape: f32[2,32,32], index: 3, kind: output, shape index: {}]
  %s4 = sld [smem:[#allocation0]]
  $region57: #{tpu_custom_call.1} parent=0
    _
  %s6 = ssub.s32 1, %s4
  %s7 = scalar_select 0, %s6, %s4
  $region1: #{tpu_custom_call.1} parent=0
    #allocation2 [shape = 'u8[32768]{0}', space=vmem, size = 0x8000, scoped, tag = 'input window, operand 0']
    #allocation3 [shape = 's32[2]{0}', space=sflag, size = 0x8, scoped, tag = 'scoped memory for tpu_custom_call.1']
    #allocation4 [shape = 's32[2]{0}', space=sflag, size = 0x8, scoped, tag = 'scoped memory for tpu_custom_call.1']
    #allocation5 [shape = 'u8[16384]{0}', space=vmem, size = 0x4000, scoped, tag = 'input window, operand 1, single buffered']
    #allocation6 [shape = 's32[1]{0}', space=sflag, size = 0x4, scoped, tag = 'scoped memory for tpu_custom_call.1']
    #allocation7 [shape = 'u8[16384]{0}', space=vmem, size = 0x4000, scoped, tag = 'input window, operand 2, single buffered']
    #allocation8 [shape = 'u8[32768]{0}', space=vmem, size = 0x8000, scoped, tag = 'output window, operand 0']
    %8 = vsyncpa [#allocation3], 0
    %s9 = scalar_lea.sflag [#allocation3], 1
    %10 = vsyncpa %s9, 0
    %11 = vsyncpa [#allocation6], 0
    %12 = vsyncpa [#allocation4], 0
    %s13 = scalar_lea.sflag [#allocation4], 1
    %14 = vsyncpa %s13, 0
    loop: start=0, step=1, limit=4
    $region2: #{tpu_custom_call.1} parent=1 // loop_pre_header
      _
    $region3: #{tpu_custom_call.1} parent=1 // loop_header
      %s16 = sphi 0, %s20
      %p17 = scmp.ge.s32.totalorder %s16, 4
      %s26 = sphi 0, %s28
      %s29 = sphi 0, %s26
      %s30 = sphi 0, %s29
      %s46 = sphi 0, %s30
      %s50 = sphi 0, %s50
      %s52 = sphi 0, %s50
      %s53 = sphi 0, %s52
      %s67 = sphi 0, %s53
      %s71 = sphi 0, %s71
      %s73 = sphi 0, %s71
      %s74 = sphi 0, %s73
      %s88 = sphi 0, %s74
      %s94 = sphi 0, %s96
      %s97 = sphi 0, %s94
      %s98 = sphi 0, %s97
      %s114 = sphi 0, %s98
    $region4: #{tpu_custom_call.1} parent=1 // loop_header_branch
      %19 = sbr.rel (%p17) target = $region8
    $region5: #{tpu_custom_call.1} parent=1 // loop_body
      %s21 = ssub.s32 %s16, 1
      %s22 = ssub.s32 %s16, 2
      %s23 = sadd.s32 %s16, 1
      %s24 = ssub.s32 %s16, %s23
      %p25 = scmp.eq.s32.totalorder %s24, 0
      %s27 = sadd.s32 %s26, 1
      %s28 = scalar_select %p25, %s26, %s27
      %p31 = pneg %p25
      %p32 = scmp.eq.s32.totalorder %s16, 1
      %p33 = por %p31, %p32
      %p34 = scmp.ne.s32.totalorder %s26, %s29
      %p35 = scmp.eq.s32.totalorder %s16, 0
      %p36 = por %p34, %p35
      %p37 = scmp.ne.s32.totalorder %s26, %s29
      %p38 = scmp.eq.s32.totalorder %s21, 1
      %p39 = por %p37, %p38
      %p40 = scmp.ne.s32.totalorder %s29, %s30
      %p41 = scmp.eq.s32.totalorder %s21, 0
      %p42 = por %p40, %p41
      %p43 = scmp.ne.s32.totalorder %s29, %s30
      %p44 = scmp.eq.s32.totalorder %s22, 1
      %p45 = por %p43, %p44
      %p47 = scmp.ne.s32.totalorder %s30, %s46
      %p48 = scmp.eq.s32.totalorder %s22, 0
      %p49 = por %p47, %p48
      %s51 = sadd.s32 %s50, 1
      %p54 = scmp.eq.s32.totalorder %s16, 1
      %p55 = scmp.ne.s32.totalorder %s50, %s52
      %p56 = scmp.eq.s32.totalorder %s16, 0
      %p57 = por %p55, %p56
      %p58 = scmp.ne.s32.totalorder %s50, %s52
      %p59 = scmp.eq.s32.totalorder %s21, 1
      %p60 = por %p58, %p59
      %p61 = scmp.ne.s32.totalorder %s52, %s53
      %p62 = scmp.eq.s32.totalorder %s21, 0
      %p63 = por %p61, %p62
      %p64 = scmp.ne.s32.totalorder %s52, %s53
      %p65 = scmp.eq.s32.totalorder %s22, 1
      %p66 = por %p64, %p65
      %p68 = scmp.ne.s32.totalorder %s53, %s67
      %p69 = scmp.eq.s32.totalorder %s22, 0
      %p70 = por %p68, %p69
      %s72 = sadd.s32 %s71, 1
      %p75 = scmp.eq.s32.totalorder %s16, 1
      %p76 = scmp.ne.s32.totalorder %s71, %s73
      %p77 = scmp.eq.s32.totalorder %s16, 0
      %p78 = por %p76, %p77
      %p79 = scmp.ne.s32.totalorder %s71, %s73
      %p80 = scmp.eq.s32.totalorder %s21, 1
      %p81 = por %p79, %p80
      %p82 = scmp.ne.s32.totalorder %s73, %s74
      %p83 = scmp.eq.s32.totalorder %s21, 0
      %p84 = por %p82, %p83
      %p85 = scmp.ne.s32.totalorder %s73, %s74
      %p86 = scmp.eq.s32.totalorder %s22, 1
      %p87 = por %p85, %p86
      %p89 = scmp.ne.s32.totalorder %s74, %s88
      %p90 = scmp.eq.s32.totalorder %s22, 0
      %p91 = por %p89, %p90
      %s92 = ssub.s32 %s16, %s23
      %p93 = scmp.eq.s32.totalorder %s92, 0
      %s95 = sadd.s32 %s94, 1
      %s96 = scalar_select %p93, %s94, %s95
      %p99 = pneg %p93
      %p100 = scmp.eq.s32.totalorder %s16, 1
      %p101 = por %p99, %p100
      %p102 = scmp.ne.s32.totalorder %s94, %s97
      %p103 = scmp.eq.s32.totalorder %s16, 0
      %p104 = por %p102, %p103
      %p105 = scmp.ne.s32.totalorder %s94, %s97
      %p106 = scmp.eq.s32.totalorder %s21, 1
      %p107 = por %p105, %p106
      %p108 = scmp.ne.s32.totalorder %s97, %s98
      %p109 = scmp.eq.s32.totalorder %s21, 0
      %p110 = por %p108, %p109
      %p111 = scmp.ne.s32.totalorder %s97, %s98
      %p112 = scmp.eq.s32.totalorder %s22, 1
      %p113 = por %p111, %p112
      %p115 = scmp.ne.s32.totalorder %s98, %s114
      %p116 = scmp.eq.s32.totalorder %s22, 0
      %p117 = por %p115, %p116
      %p118 = scmp.le.s32.totalorder 1, %s16
      %p119 = scmp.lt.s32.totalorder %s16, 3
      %p120 = pnand %p118, %p119
      %p121 = pneg %p120
      // Predicated region
      $region9: #{tpu_custom_call.1} parent=5 // pred_check
        _
      $region10: #{tpu_custom_call.1} parent=5 // pred_check_branch
        %123 = sbr.rel (%p120) target = $region12
      $region11: #{tpu_custom_call.1} parent=5 // pred_region
        %s124 = ssub.s32 %s16, 1
        // Predicated region
        $region13: #{tpu_custom_call.1} parent=11 // pred_check
          %p125 = pneg %p63
        $region14: #{tpu_custom_call.1} parent=11 // pred_check_branch
          %127 = sbr.rel (%p125) target = $region16
        $region15: #{tpu_custom_call.1} parent=11 // pred_region
          %129 = vsyncadd [#allocation6], 0
          %s130 = sshll.u32 %s1, 4
          %s131 = int_to_ptr.hbm [resolvable:$true] %s130
          %s132 = sshll.u32 [#allocation5], 4
          %s133 = int_to_ptr.vmem [resolvable:$true] %s132
          %138 = dma.hbm_to_vmem [thread:$0]  %s131, 512, %s133, [#allocation6], 128, 128, 8
        $region16: #{tpu_custom_call.1} parent=11 // pred_fallthru
          _
        // Predicated region
        $region17: #{tpu_custom_call.1} parent=11 // pred_check
          %p139 = pneg %p84
        $region18: #{tpu_custom_call.1} parent=11 // pred_check_branch
          %141 = sbr.rel (%p139) target = $region20
        $region19: #{tpu_custom_call.1} parent=11 // pred_region
          %143 = vsyncadd [#allocation6], 0
          %s144 = sshll.u32 %s2, 4
          %s145 = int_to_ptr.hbm [resolvable:$true] %s144
          %s146 = sshll.u32 [#allocation7], 4
          %s147 = int_to_ptr.vmem [resolvable:$true] %s146
          %152 = dma.hbm_to_vmem [thread:$0]  %s145, 512, %s147, [#allocation6], 128, 128, 8
        $region20: #{tpu_custom_call.1} parent=11 // pred_fallthru
          _
      $region12: #{tpu_custom_call.1} parent=5 // pred_fallthru
        _
      %p153 = scmp.lt.s32.totalorder %s16, 2
      // Predicated region
      $region21: #{tpu_custom_call.1} parent=5 // pred_check
        %p154 = pneg %p153
      $region22: #{tpu_custom_call.1} parent=5 // pred_check_branch
        %156 = sbr.rel (%p154) target = $region24
      $region23: #{tpu_custom_call.1} parent=5 // pred_region
        // Predicated region
        $region25: #{tpu_custom_call.1} parent=23 // pred_check
          %p157 = pneg %p36
        $region26: #{tpu_custom_call.1} parent=23 // pred_check_branch
          %159 = sbr.rel (%p157) target = $region28
        $region27: #{tpu_custom_call.1} parent=23 // pred_region
          %s160 = sand.u32 %s26, 1
          %s161 = scalar_lea.sflag [#allocation3], %s160
          %s162 = sand.u32 %s26, 1
          %s163 = smul.addr %s162, 32
          %s164 = scalar_lea.vmem [#allocation2], %s163
          %166 = vsyncadd %s161, 0
          %s167 = smul.addr %s16, 4
          %s168 = smul.addr %s167, 8
          %s169 = scalar_lea.hbm %s0, %s168
          %s170 = sshll.u32 %s169, 4
          %s171 = int_to_ptr.hbm [resolvable:$true] %s170
          %s172 = sshll.u32 %s164, 4
          %s173 = int_to_ptr.vmem [resolvable:$true] %s172
          %178 = dma.hbm_to_vmem [thread:$0]  %s171, 512, %s173, %s161, 128, 128, 8
        $region28: #{tpu_custom_call.1} parent=23 // pred_fallthru
          _
      $region24: #{tpu_custom_call.1} parent=5 // pred_fallthru
        _
      %p179 = scmp.le.s32.totalorder 1, %s16
      %p180 = scmp.lt.s32.totalorder %s16, 3
      %p181 = pnand %p179, %p180
      %p182 = pneg %p181
      // Predicated region
      $region29: #{tpu_custom_call.1} parent=5 // pred_check
        _
      $region30: #{tpu_custom_call.1} parent=5 // pred_check_branch
        %184 = sbr.rel (%p181) target = $region32
      $region31: #{tpu_custom_call.1} parent=5 // pred_region
        %s185 = ssub.s32 %s16, 1
        %s186 = sand.u32 %s29, 1
        %s187 = scalar_lea.sflag [#allocation3], %s186
        %s188 = sand.u32 %s29, 1
        %s189 = smul.addr %s188, 32
        %s190 = scalar_lea.vmem [#allocation2], %s189
        // Predicated region
        $region33: #{tpu_custom_call.1} parent=31 // pred_check
          %p191 = pneg %p42
        $region34: #{tpu_custom_call.1} parent=31 // pred_check_branch
          %193 = sbr.rel (%p191) target = $region36
        $region35: #{tpu_custom_call.1} parent=31 // pred_region
          %195 = dma.done %s187, 512
        $region36: #{tpu_custom_call.1} parent=31 // pred_fallthru
          _
        // Predicated region
        $region37: #{tpu_custom_call.1} parent=31 // pred_check
          %p196 = pneg %p63
        $region38: #{tpu_custom_call.1} parent=31 // pred_check_branch
          %198 = sbr.rel (%p196) target = $region40
        $region39: #{tpu_custom_call.1} parent=31 // pred_region
          %200 = dma.done [#allocation6], 512
        $region40: #{tpu_custom_call.1} parent=31 // pred_fallthru
          _
        // Predicated region
        $region41: #{tpu_custom_call.1} parent=31 // pred_check
          %p201 = pneg %p84
        $region42: #{tpu_custom_call.1} parent=31 // pred_check_branch
          %203 = sbr.rel (%p201) target = $region44
        $region43: #{tpu_custom_call.1} parent=31 // pred_region
          %205 = dma.done [#allocation6], 512
        $region44: #{tpu_custom_call.1} parent=31 // pred_fallthru
          _
        %s206 = sand.u32 %s29, 1
        %s207 = scalar_lea.sflag [#allocation3], %s206
        %s208 = sand.u32 %s29, 1
        %s209 = smul.addr %s208, 32
        %s210 = scalar_lea.vmem [#allocation2], %s209
        %p211 = pneg %p42
        %p212 = pneg %p39
        %p213 = pneg %p63
        %p214 = pneg %p60
        %p215 = pneg %p84
        %p216 = pneg %p81
        %p217 = pneg %p110
        %p218 = pneg %p107
        %s219 = sand.u32 %s97, 1
        %s220 = scalar_lea.sflag [#allocation4], %s219
        %s221 = sand.u32 %s97, 1
        %s222 = smul.addr %s221, 32
        %s223 = scalar_lea.vmem [#allocation8], %s222
        %v224 = vld [vmem:[#allocation5] sm:$0xff]
        %v225 = vld [vmem:[#allocation5 + $0x8] sm:$0xff]
        %v226 = vld [vmem:[#allocation5 + $0x10] sm:$0xff]
        %v227 = vld [vmem:[#allocation5 + $0x18] sm:$0xff]
        %v228 = vld [vmem:[#allocation7] sm:$0xff]
        %v229 = vld [vmem:[#allocation7 + $0x8] sm:$0xff]
        %v230 = vld [vmem:[#allocation7 + $0x10] sm:$0xff]
        %v231 = vld [vmem:[#allocation7 + $0x18] sm:$0xff]
        %v232 = vld [vmem:[%s190] sm:$0xff]
        %v233 = vld [vmem:[%s190 + $0x8] sm:$0xff]
        %v234 = vld [vmem:[%s190 + $0x10] sm:$0xff]
        %v235 = vld [vmem:[%s190 + $0x18] sm:$0xff]
        %v236 = vmax.f32 %v232, 0.0
        %v237 = vmax.f32 %v233, 0.0
        %v238 = vmax.f32 %v234, 0.0
        %v239 = vmax.f32 %v235, 0.0
        %vm240 = vcmask 261120
        %v242 = vsel %vm240, %v236, 0
        %v245 = vsel %vm240, %v237, 0
        %v248 = vsel %vm240, %v238, 0
        %v251 = vsel %vm240, %v239, 0
        %253 = vmatpush.msra.mxu0 0.0
        %254 = vmatpush.msra.mxu0 0.0
        %255 = vmatpush.msra.mxu0 0.0
        %256 = vmatpush.msra.mxu0 0.0
        %257 = vmatpush.msra.mxu0 0.0
        %258 = vmatpush.msra.mxu0 0.0
        %259 = vmatpush.msra.mxu0 0.0
        %260 = vmatpush.msra.mxu0 0.0
        %261 = vmatpush.msra.mxu0 0.0
        %262 = vmatpush.msra.mxu0 0.0
        %263 = vmatpush.msra.mxu0 0.0
        %264 = vmatpush.msra.mxu0 0.0
        %v265 = vand.u32 %v231, 4294901760
        %266 = vmatpush.msra.mxu0 %v265
        %v267 = vand.u32 %v230, 4294901760
        %268 = vmatpush.msra.mxu0 %v267
        %v269 = vand.u32 %v229, 4294901760
        %270 = vmatpush.msra.mxu0 %v269
        %v271 = vand.u32 %v228, 4294901760
        %272 = vmatpush.msra.mxu0 %v271
        %v273 = vand.u32 %v242, 4294901760
        %v274 = vsub.f32 %v242, %v273
        %v275 = vand.u32 %v274, 4294901760
        %v276 = vsub.f32 %v274, %v275
        %v277 = vand.u32 %v276, 4294901760
        %278 = vmatmul.f32.gmra.mxu0 %v277
        %v279 = vpop.f32.mrf.mxu0
        %v280 = vadd.f32 0.0, %v279
        %v281 = vand.u32 %v245, 4294901760
        %v282 = vsub.f32 %v245, %v281
        %v283 = vand.u32 %v282, 4294901760
        %v284 = vsub.f32 %v282, %v283
        %v285 = vand.u32 %v284, 4294901760
        %286 = vmatmul.f32.gmra.mxu0 %v285
        %v287 = vpop.f32.mrf.mxu0
        %v288 = vadd.f32 0.0, %v287
        %v289 = vand.u32 %v248, 4294901760
        %v290 = vsub.f32 %v248, %v289
        %v291 = vand.u32 %v290, 4294901760
        %v292 = vsub.f32 %v290, %v291
        %v293 = vand.u32 %v292, 4294901760
        %294 = vmatmul.f32.gmra.mxu0 %v293
        %v295 = vpop.f32.mrf.mxu0
        %v296 = vadd.f32 0.0, %v295
        %v297 = vand.u32 %v251, 4294901760
        %v298 = vsub.f32 %v251, %v297
        %v299 = vand.u32 %v298, 4294901760
        %v300 = vsub.f32 %v298, %v299
        %v301 = vand.u32 %v300, 4294901760
        %302 = vmatmul.f32.gmra.mxu0 %v301
        %v303 = vpop.f32.mrf.mxu0
        %v304 = vadd.f32 0.0, %v303
        %305 = vdwg.mxu0
        %306 = vmatpush.msra.mxu0 0.0
        %307 = vmatpush.msra.mxu0 0.0
        %308 = vmatpush.msra.mxu0 0.0
        %309 = vmatpush.msra.mxu0 0.0
        %310 = vmatpush.msra.mxu0 0.0
        %311 = vmatpush.msra.mxu0 0.0
        %312 = vmatpush.msra.mxu0 0.0
        %313 = vmatpush.msra.mxu0 0.0
        %314 = vmatpush.msra.mxu0 0.0
        %315 = vmatpush.msra.mxu0 0.0
        %316 = vmatpush.msra.mxu0 0.0
        %317 = vmatpush.msra.mxu0 0.0
        %v318 = vand.u32 %v231, 4294901760
        %v319 = vsub.f32 %v231, %v318
        %v320 = vand.u32 %v319, 4294901760
        %v321 = vsub.f32 %v319, %v320
        %v322 = vand.u32 %v321, 4294901760
        %323 = vmatpush.msra.mxu0 %v322
        %v324 = vand.u32 %v230, 4294901760
        %v325 = vsub.f32 %v230, %v324
        %v326 = vand.u32 %v325, 4294901760
        %v327 = vsub.f32 %v325, %v326
        %v328 = vand.u32 %v327, 4294901760
        %329 = vmatpush.msra.mxu0 %v328
        %v330 = vand.u32 %v229, 4294901760
        %v331 = vsub.f32 %v229, %v330
        %v332 = vand.u32 %v331, 4294901760
        %v333 = vsub.f32 %v331, %v332
        %v334 = vand.u32 %v333, 4294901760
        %335 = vmatpush.msra.mxu0 %v334
        %v336 = vand.u32 %v228, 4294901760
        %v337 = vsub.f32 %v228, %v336
        %v338 = vand.u32 %v337, 4294901760
        %v339 = vsub.f32 %v337, %v338
        %v340 = vand.u32 %v339, 4294901760
        %341 = vmatpush.msra.mxu0 %v340
        %v342 = vand.u32 %v242, 4294901760
        %343 = vmatmul.f32.gmra.mxu0 %v342
        %v344 = vpop.f32.mrf.mxu0
        %v345 = vadd.f32 %v280, %v344
        %v346 = vand.u32 %v245, 4294901760
        %347 = vmatmul.f32.gmra.mxu0 %v346
        %v348 = vpop.f32.mrf.mxu0
        %v349 = vadd.f32 %v288, %v348
        %v350 = vand.u32 %v248, 4294901760
        %351 = vmatmul.f32.gmra.mxu0 %v350
        %v352 = vpop.f32.mrf.mxu0
        %v353 = vadd.f32 %v296, %v352
        %v354 = vand.u32 %v251, 4294901760
        %355 = vmatmul.f32.gmra.mxu0 %v354
        %v356 = vpop.f32.mrf.mxu0
        %v357 = vadd.f32 %v304, %v356
        %358 = vdwg.mxu0
        %359 = vmatpush.msra.mxu0 0.0
        %360 = vmatpush.msra.mxu0 0.0
        %361 = vmatpush.msra.mxu0 0.0
        %362 = vmatpush.msra.mxu0 0.0
        %363 = vmatpush.msra.mxu0 0.0
        %364 = vmatpush.msra.mxu0 0.0
        %365 = vmatpush.msra.mxu0 0.0
        %366 = vmatpush.msra.mxu0 0.0
        %367 = vmatpush.msra.mxu0 0.0
        %368 = vmatpush.msra.mxu0 0.0
        %369 = vmatpush.msra.mxu0 0.0
        %370 = vmatpush.msra.mxu0 0.0
        %v371 = vand.u32 %v231, 4294901760
        %v372 = vsub.f32 %v231, %v371
        %373 = vmatpush.msra.mxu0 %v372
        %v374 = vand.u32 %v230, 4294901760
        %v375 = vsub.f32 %v230, %v374
        %376 = vmatpush.msra.mxu0 %v375
        %v377 = vand.u32 %v229, 4294901760
        %v378 = vsub.f32 %v229, %v377
        %379 = vmatpush.msra.mxu0 %v378
        %v380 = vand.u32 %v228, 4294901760
        %v381 = vsub.f32 %v228, %v380
        %382 = vmatpush.msra.mxu0 %v381
        %v383 = vand.u32 %v242, 4294901760
        %v384 = vsub.f32 %v242, %v383
        %385 = vmatmul.f32.gmra.mxu0 %v384
        %v386 = vpop.f32.mrf.mxu0
        %v387 = vadd.f32 %v345, %v386
        %v388 = vand.u32 %v245, 4294901760
        %v389 = vsub.f32 %v245, %v388
        %390 = vmatmul.f32.gmra.mxu0 %v389
        %v391 = vpop.f32.mrf.mxu0
        %v392 = vadd.f32 %v349, %v391
        %v393 = vand.u32 %v248, 4294901760
        %v394 = vsub.f32 %v248, %v393
        %395 = vmatmul.f32.gmra.mxu0 %v394
        %v396 = vpop.f32.mrf.mxu0
        %v397 = vadd.f32 %v353, %v396
        %v398 = vand.u32 %v251, 4294901760
        %v399 = vsub.f32 %v251, %v398
        %400 = vmatmul.f32.gmra.mxu0 %v399
        %v401 = vpop.f32.mrf.mxu0
        %v402 = vadd.f32 %v357, %v401
        %403 = vdwg.mxu0
        %404 = vmatpush.msra.mxu0 0.0
        %405 = vmatpush.msra.mxu0 0.0
        %406 = vmatpush.msra.mxu0 0.0
        %407 = vmatpush.msra.mxu0 0.0
        %408 = vmatpush.msra.mxu0 0.0
        %409 = vmatpush.msra.mxu0 0.0
        %410 = vmatpush.msra.mxu0 0.0
        %411 = vmatpush.msra.mxu0 0.0
        %412 = vmatpush.msra.mxu0 0.0
        %413 = vmatpush.msra.mxu0 0.0
        %414 = vmatpush.msra.mxu0 0.0
        %415 = vmatpush.msra.mxu0 0.0
        %v416 = vand.u32 %v231, 4294901760
        %417 = vmatpush.msra.mxu0 %v416
        %v418 = vand.u32 %v230, 4294901760
        %419 = vmatpush.msra.mxu0 %v418
        %v420 = vand.u32 %v229, 4294901760
        %421 = vmatpush.msra.mxu0 %v420
        %v422 = vand.u32 %v228, 4294901760
        %423 = vmatpush.msra.mxu0 %v422
        %v424 = vand.u32 %v242, 4294901760
        %v425 = vsub.f32 %v242, %v424
        %v426 = vand.u32 %v425, 4294901760
        %427 = vmatmul.f32.gmra.mxu0 %v426
        %v428 = vpop.f32.mrf.mxu0
        %v429 = vadd.f32 %v387, %v428
        %v430 = vand.u32 %v245, 4294901760
        %v431 = vsub.f32 %v245, %v430
        %v432 = vand.u32 %v431, 4294901760
        %433 = vmatmul.f32.gmra.mxu0 %v432
        %v434 = vpop.f32.mrf.mxu0
        %v435 = vadd.f32 %v392, %v434
        %v436 = vand.u32 %v248, 4294901760
        %v437 = vsub.f32 %v248, %v436
        %v438 = vand.u32 %v437, 4294901760
        %439 = vmatmul.f32.gmra.mxu0 %v438
        %v440 = vpop.f32.mrf.mxu0
        %v441 = vadd.f32 %v397, %v440
        %v442 = vand.u32 %v251, 4294901760
        %v443 = vsub.f32 %v251, %v442
        %v444 = vand.u32 %v443, 4294901760
        %445 = vmatmul.f32.gmra.mxu0 %v444
        %v446 = vpop.f32.mrf.mxu0
        %v447 = vadd.f32 %v402, %v446
        %448 = vdwg.mxu0
        %449 = vmatpush.msra.mxu0 0.0
        %450 = vmatpush.msra.mxu0 0.0
        %451 = vmatpush.msra.mxu0 0.0
        %452 = vmatpush.msra.mxu0 0.0
        %453 = vmatpush.msra.mxu0 0.0
        %454 = vmatpush.msra.mxu0 0.0
        %455 = vmatpush.msra.mxu0 0.0
        %456 = vmatpush.msra.mxu0 0.0
        %457 = vmatpush.msra.mxu0 0.0
        %458 = vmatpush.msra.mxu0 0.0
        %459 = vmatpush.msra.mxu0 0.0
        %460 = vmatpush.msra.mxu0 0.0
        %v461 = vand.u32 %v231, 4294901760
        %v462 = vsub.f32 %v231, %v461
        %v463 = vand.u32 %v462, 4294901760
        %464 = vmatpush.msra.mxu0 %v463
        %v465 = vand.u32 %v230, 4294901760
        %v466 = vsub.f32 %v230, %v465
        %v467 = vand.u32 %v466, 4294901760
        %468 = vmatpush.msra.mxu0 %v467
        %v469 = vand.u32 %v229, 4294901760
        %v470 = vsub.f32 %v229, %v469
        %v471 = vand.u32 %v470, 4294901760
        %472 = vmatpush.msra.mxu0 %v471
        %v473 = vand.u32 %v228, 4294901760
        %v474 = vsub.f32 %v228, %v473
        %v475 = vand.u32 %v474, 4294901760
        %476 = vmatpush.msra.mxu0 %v475
        %v477 = vand.u32 %v242, 4294901760
        %478 = vmatmul.f32.gmra.mxu0 %v477
        %v479 = vpop.f32.mrf.mxu0
        %v480 = vadd.f32 %v429, %v479
        %v481 = vand.u32 %v245, 4294901760
        %482 = vmatmul.f32.gmra.mxu0 %v481
        %v483 = vpop.f32.mrf.mxu0
        %v484 = vadd.f32 %v435, %v483
        %v485 = vand.u32 %v248, 4294901760
        %486 = vmatmul.f32.gmra.mxu0 %v485
        %v487 = vpop.f32.mrf.mxu0
        %v488 = vadd.f32 %v441, %v487
        %v489 = vand.u32 %v251, 4294901760
        %490 = vmatmul.f32.gmra.mxu0 %v489
        %v491 = vpop.f32.mrf.mxu0
        %v492 = vadd.f32 %v447, %v491
        %493 = vdwg.mxu0
        %494 = vmatpush.msra.mxu0 0.0
        %495 = vmatpush.msra.mxu0 0.0
        %496 = vmatpush.msra.mxu0 0.0
        %497 = vmatpush.msra.mxu0 0.0
        %498 = vmatpush.msra.mxu0 0.0
        %499 = vmatpush.msra.mxu0 0.0
        %500 = vmatpush.msra.mxu0 0.0
        %501 = vmatpush.msra.mxu0 0.0
        %502 = vmatpush.msra.mxu0 0.0
        %503 = vmatpush.msra.mxu0 0.0
        %504 = vmatpush.msra.mxu0 0.0
        %505 = vmatpush.msra.mxu0 0.0
        %v506 = vand.u32 %v231, 4294901760
        %507 = vmatpush.msra.mxu0 %v506
        %v508 = vand.u32 %v230, 4294901760
        %509 = vmatpush.msra.mxu0 %v508
        %v510 = vand.u32 %v229, 4294901760
        %511 = vmatpush.msra.mxu0 %v510
        %v512 = vand.u32 %v228, 4294901760
        %513 = vmatpush.msra.mxu0 %v512
        %v514 = vand.u32 %v242, 4294901760
        %515 = vmatmul.f32.gmra.mxu0 %v514
        %v516 = vpop.f32.mrf.mxu0
        %v517 = vadd.f32 %v480, %v516
        %v518 = vand.u32 %v245, 4294901760
        %519 = vmatmul.f32.gmra.mxu0 %v518
        %v520 = vpop.f32.mrf.mxu0
        %v521 = vadd.f32 %v484, %v520
        %v522 = vand.u32 %v248, 4294901760
        %523 = vmatmul.f32.gmra.mxu0 %v522
        %v524 = vpop.f32.mrf.mxu0
        %v525 = vadd.f32 %v488, %v524
        %v526 = vand.u32 %v251, 4294901760
        %527 = vmatmul.f32.gmra.mxu0 %v526
        %v528 = vpop.f32.mrf.mxu0
        %v529 = vadd.f32 %v492, %v528
        %530 = vdwg.mxu0
        %v532 = vsel %vm240, %v224, 0
        %v535 = vsel %vm240, %v225, 0
        %v538 = vsel %vm240, %v226, 0
        %v541 = vsel %vm240, %v227, 0
        %543 = vmatpush.msra.mxu0 0.0
        %544 = vmatpush.msra.mxu0 0.0
        %545 = vmatpush.msra.mxu0 0.0
        %546 = vmatpush.msra.mxu0 0.0
        %547 = vmatpush.msra.mxu0 0.0
        %548 = vmatpush.msra.mxu0 0.0
        %549 = vmatpush.msra.mxu0 0.0
        %550 = vmatpush.msra.mxu0 0.0
        %551 = vmatpush.msra.mxu0 0.0
        %552 = vmatpush.msra.mxu0 0.0
        %553 = vmatpush.msra.mxu0 0.0
        %554 = vmatpush.msra.mxu0 0.0
        %v555 = vand.u32 %v529, 4294901760
        %556 = vmatpush.msra.mxu0 %v555
        %v557 = vand.u32 %v525, 4294901760
        %558 = vmatpush.msra.mxu0 %v557
        %v559 = vand.u32 %v521, 4294901760
        %560 = vmatpush.msra.mxu0 %v559
        %v561 = vand.u32 %v517, 4294901760
        %562 = vmatpush.msra.mxu0 %v561
        %v563 = vand.u32 %v532, 4294901760
        %v564 = vsub.f32 %v532, %v563
        %v565 = vand.u32 %v564, 4294901760
        %v566 = vsub.f32 %v564, %v565
        %v567 = vand.u32 %v566, 4294901760
        %568 = vmatmul.f32.gmra.mxu0 %v567
        %v569 = vpop.f32.mrf.mxu0
        %v570 = vadd.f32 0.0, %v569
        %v571 = vand.u32 %v535, 4294901760
        %v572 = vsub.f32 %v535, %v571
        %v573 = vand.u32 %v572, 4294901760
        %v574 = vsub.f32 %v572, %v573
        %v575 = vand.u32 %v574, 4294901760
        %576 = vmatmul.f32.gmra.mxu0 %v575
        %v577 = vpop.f32.mrf.mxu0
        %v578 = vadd.f32 0.0, %v577
        %v579 = vand.u32 %v538, 4294901760
        %v580 = vsub.f32 %v538, %v579
        %v581 = vand.u32 %v580, 4294901760
        %v582 = vsub.f32 %v580, %v581
        %v583 = vand.u32 %v582, 4294901760
        %584 = vmatmul.f32.gmra.mxu0 %v583
        %v585 = vpop.f32.mrf.mxu0
        %v586 = vadd.f32 0.0, %v585
        %v587 = vand.u32 %v541, 4294901760
        %v588 = vsub.f32 %v541, %v587
        %v589 = vand.u32 %v588, 4294901760
        %v590 = vsub.f32 %v588, %v589
        %v591 = vand.u32 %v590, 4294901760
        %592 = vmatmul.f32.gmra.mxu0 %v591
        %v593 = vpop.f32.mrf.mxu0
        %v594 = vadd.f32 0.0, %v593
        %595 = vdwg.mxu0
        %596 = vmatpush.msra.mxu0 0.0
        %597 = vmatpush.msra.mxu0 0.0
        %598 = vmatpush.msra.mxu0 0.0
        %599 = vmatpush.msra.mxu0 0.0
        %600 = vmatpush.msra.mxu0 0.0
        %601 = vmatpush.msra.mxu0 0.0
        %602 = vmatpush.msra.mxu0 0.0
        %603 = vmatpush.msra.mxu0 0.0
        %604 = vmatpush.msra.mxu0 0.0
        %605 = vmatpush.msra.mxu0 0.0
        %606 = vmatpush.msra.mxu0 0.0
        %607 = vmatpush.msra.mxu0 0.0
        %v608 = vand.u32 %v529, 4294901760
        %v609 = vsub.f32 %v529, %v608
        %v610 = vand.u32 %v609, 4294901760
        %v611 = vsub.f32 %v609, %v610
        %v612 = vand.u32 %v611, 4294901760
        %613 = vmatpush.msra.mxu0 %v612
        %v614 = vand.u32 %v525, 4294901760
        %v615 = vsub.f32 %v525, %v614
        %v616 = vand.u32 %v615, 4294901760
        %v617 = vsub.f32 %v615, %v616
        %v618 = vand.u32 %v617, 4294901760
        %619 = vmatpush.msra.mxu0 %v618
        %v620 = vand.u32 %v521, 4294901760
        %v621 = vsub.f32 %v521, %v620
        %v622 = vand.u32 %v621, 4294901760
        %v623 = vsub.f32 %v621, %v622
        %v624 = vand.u32 %v623, 4294901760
        %625 = vmatpush.msra.mxu0 %v624
        %v626 = vand.u32 %v517, 4294901760
        %v627 = vsub.f32 %v517, %v626
        %v628 = vand.u32 %v627, 4294901760
        %v629 = vsub.f32 %v627, %v628
        %v630 = vand.u32 %v629, 4294901760
        %631 = vmatpush.msra.mxu0 %v630
        %v632 = vand.u32 %v532, 4294901760
        %633 = vmatmul.f32.gmra.mxu0 %v632
        %v634 = vpop.f32.mrf.mxu0
        %v635 = vadd.f32 %v570, %v634
        %v636 = vand.u32 %v535, 4294901760
        %637 = vmatmul.f32.gmra.mxu0 %v636
        %v638 = vpop.f32.mrf.mxu0
        %v639 = vadd.f32 %v578, %v638
        %v640 = vand.u32 %v538, 4294901760
        %641 = vmatmul.f32.gmra.mxu0 %v640
        %v642 = vpop.f32.mrf.mxu0
        %v643 = vadd.f32 %v586, %v642
        %v644 = vand.u32 %v541, 4294901760
        %645 = vmatmul.f32.gmra.mxu0 %v644
        %v646 = vpop.f32.mrf.mxu0
        %v647 = vadd.f32 %v594, %v646
        %648 = vdwg.mxu0
        %649 = vmatpush.msra.mxu0 0.0
        %650 = vmatpush.msra.mxu0 0.0
        %651 = vmatpush.msra.mxu0 0.0
        %652 = vmatpush.msra.mxu0 0.0
        %653 = vmatpush.msra.mxu0 0.0
        %654 = vmatpush.msra.mxu0 0.0
        %655 = vmatpush.msra.mxu0 0.0
        %656 = vmatpush.msra.mxu0 0.0
        %657 = vmatpush.msra.mxu0 0.0
        %658 = vmatpush.msra.mxu0 0.0
        %659 = vmatpush.msra.mxu0 0.0
        %660 = vmatpush.msra.mxu0 0.0
        %v661 = vand.u32 %v529, 4294901760
        %v662 = vsub.f32 %v529, %v661
        %663 = vmatpush.msra.mxu0 %v662
        %v664 = vand.u32 %v525, 4294901760
        %v665 = vsub.f32 %v525, %v664
        %666 = vmatpush.msra.mxu0 %v665
        %v667 = vand.u32 %v521, 4294901760
        %v668 = vsub.f32 %v521, %v667
        %669 = vmatpush.msra.mxu0 %v668
        %v670 = vand.u32 %v517, 4294901760
        %v671 = vsub.f32 %v517, %v670
        %672 = vmatpush.msra.mxu0 %v671
        %v673 = vand.u32 %v532, 4294901760
        %v674 = vsub.f32 %v532, %v673
        %675 = vmatmul.f32.gmra.mxu0 %v674
        %v676 = vpop.f32.mrf.mxu0
        %v677 = vadd.f32 %v635, %v676
        %v678 = vand.u32 %v535, 4294901760
        %v679 = vsub.f32 %v535, %v678
        %680 = vmatmul.f32.gmra.mxu0 %v679
        %v681 = vpop.f32.mrf.mxu0
        %v682 = vadd.f32 %v639, %v681
        %v683 = vand.u32 %v538, 4294901760
        %v684 = vsub.f32 %v538, %v683
        %685 = vmatmul.f32.gmra.mxu0 %v684
        %v686 = vpop.f32.mrf.mxu0
        %v687 = vadd.f32 %v643, %v686
        %v688 = vand.u32 %v541, 4294901760
        %v689 = vsub.f32 %v541, %v688
        %690 = vmatmul.f32.gmra.mxu0 %v689
        %v691 = vpop.f32.mrf.mxu0
        %v692 = vadd.f32 %v647, %v691
        %693 = vdwg.mxu0
        %694 = vmatpush.msra.mxu0 0.0
        %695 = vmatpush.msra.mxu0 0.0
        %696 = vmatpush.msra.mxu0 0.0
        %697 = vmatpush.msra.mxu0 0.0
        %698 = vmatpush.msra.mxu0 0.0
        %699 = vmatpush.msra.mxu0 0.0
        %700 = vmatpush.msra.mxu0 0.0
        %701 = vmatpush.msra.mxu0 0.0
        %702 = vmatpush.msra.mxu0 0.0
        %703 = vmatpush.msra.mxu0 0.0
        %704 = vmatpush.msra.mxu0 0.0
        %705 = vmatpush.msra.mxu0 0.0
        %v706 = vand.u32 %v529, 4294901760
        %707 = vmatpush.msra.mxu0 %v706
        %v708 = vand.u32 %v525, 4294901760
        %709 = vmatpush.msra.mxu0 %v708
        %v710 = vand.u32 %v521, 4294901760
        %711 = vmatpush.msra.mxu0 %v710
        %v712 = vand.u32 %v517, 4294901760
        %713 = vmatpush.msra.mxu0 %v712
        %v714 = vand.u32 %v532, 4294901760
        %v715 = vsub.f32 %v532, %v714
        %v716 = vand.u32 %v715, 4294901760
        %717 = vmatmul.f32.gmra.mxu0 %v716
        %v718 = vpop.f32.mrf.mxu0
        %v719 = vadd.f32 %v677, %v718
        %v720 = vand.u32 %v535, 4294901760
        %v721 = vsub.f32 %v535, %v720
        %v722 = vand.u32 %v721, 4294901760
        %723 = vmatmul.f32.gmra.mxu0 %v722
        %v724 = vpop.f32.mrf.mxu0
        %v725 = vadd.f32 %v682, %v724
        %v726 = vand.u32 %v538, 4294901760
        %v727 = vsub.f32 %v538, %v726
        %v728 = vand.u32 %v727, 4294901760
        %729 = vmatmul.f32.gmra.mxu0 %v728
        %v730 = vpop.f32.mrf.mxu0
        %v731 = vadd.f32 %v687, %v730
        %v732 = vand.u32 %v541, 4294901760
        %v733 = vsub.f32 %v541, %v732
        %v734 = vand.u32 %v733, 4294901760
        %735 = vmatmul.f32.gmra.mxu0 %v734
        %v736 = vpop.f32.mrf.mxu0
        %v737 = vadd.f32 %v692, %v736
        %738 = vdwg.mxu0
        %739 = vmatpush.msra.mxu0 0.0
        %740 = vmatpush.msra.mxu0 0.0
        %741 = vmatpush.msra.mxu0 0.0
        %742 = vmatpush.msra.mxu0 0.0
        %743 = vmatpush.msra.mxu0 0.0
        %744 = vmatpush.msra.mxu0 0.0
        %745 = vmatpush.msra.mxu0 0.0
        %746 = vmatpush.msra.mxu0 0.0
        %747 = vmatpush.msra.mxu0 0.0
        %748 = vmatpush.msra.mxu0 0.0
        %749 = vmatpush.msra.mxu0 0.0
        %750 = vmatpush.msra.mxu0 0.0
        %v751 = vand.u32 %v529, 4294901760
        %v752 = vsub.f32 %v529, %v751
        %v753 = vand.u32 %v752, 4294901760
        %754 = vmatpush.msra.mxu0 %v753
        %v755 = vand.u32 %v525, 4294901760
        %v756 = vsub.f32 %v525, %v755
        %v757 = vand.u32 %v756, 4294901760
        %758 = vmatpush.msra.mxu0 %v757
        %v759 = vand.u32 %v521, 4294901760
        %v760 = vsub.f32 %v521, %v759
        %v761 = vand.u32 %v760, 4294901760
        %762 = vmatpush.msra.mxu0 %v761
        %v763 = vand.u32 %v517, 4294901760
        %v764 = vsub.f32 %v517, %v763
        %v765 = vand.u32 %v764, 4294901760
        %766 = vmatpush.msra.mxu0 %v765
        %v767 = vand.u32 %v532, 4294901760
        %768 = vmatmul.f32.gmra.mxu0 %v767
        %v769 = vpop.f32.mrf.mxu0
        %v770 = vadd.f32 %v719, %v769
        %v771 = vand.u32 %v535, 4294901760
        %772 = vmatmul.f32.gmra.mxu0 %v771
        %v773 = vpop.f32.mrf.mxu0
        %v774 = vadd.f32 %v725, %v773
        %v775 = vand.u32 %v538, 4294901760
        %776 = vmatmul.f32.gmra.mxu0 %v775
        %v777 = vpop.f32.mrf.mxu0
        %v778 = vadd.f32 %v731, %v777
        %v779 = vand.u32 %v541, 4294901760
        %780 = vmatmul.f32.gmra.mxu0 %v779
        %v781 = vpop.f32.mrf.mxu0
        %v782 = vadd.f32 %v737, %v781
        %783 = vdwg.mxu0
        %784 = vmatpush.msra.mxu0 0.0
        %785 = vmatpush.msra.mxu0 0.0
        %786 = vmatpush.msra.mxu0 0.0
        %787 = vmatpush.msra.mxu0 0.0
        %788 = vmatpush.msra.mxu0 0.0
        %789 = vmatpush.msra.mxu0 0.0
        %790 = vmatpush.msra.mxu0 0.0
        %791 = vmatpush.msra.mxu0 0.0
        %792 = vmatpush.msra.mxu0 0.0
        %793 = vmatpush.msra.mxu0 0.0
        %794 = vmatpush.msra.mxu0 0.0
        %795 = vmatpush.msra.mxu0 0.0
        %v796 = vand.u32 %v529, 4294901760
        %797 = vmatpush.msra.mxu0 %v796
        %v798 = vand.u32 %v525, 4294901760
        %799 = vmatpush.msra.mxu0 %v798
        %v800 = vand.u32 %v521, 4294901760
        %801 = vmatpush.msra.mxu0 %v800
        %v802 = vand.u32 %v517, 4294901760
        %803 = vmatpush.msra.mxu0 %v802
        %v804 = vand.u32 %v532, 4294901760
        %805 = vmatmul.f32.gmra.mxu0 %v804
        %v806 = vpop.f32.mrf.mxu0
        %v807 = vadd.f32 %v770, %v806
        %v808 = vand.u32 %v535, 4294901760
        %809 = vmatmul.f32.gmra.mxu0 %v808
        %v810 = vpop.f32.mrf.mxu0
        %v811 = vadd.f32 %v774, %v810
        %v812 = vand.u32 %v538, 4294901760
        %813 = vmatmul.f32.gmra.mxu0 %v812
        %v814 = vpop.f32.mrf.mxu0
        %v815 = vadd.f32 %v778, %v814
        %v816 = vand.u32 %v541, 4294901760
        %817 = vmatmul.f32.gmra.mxu0 %v816
        %v818 = vpop.f32.mrf.mxu0
        %v819 = vadd.f32 %v782, %v818
        %820 = vdwg.mxu0
        %v821 = vsel %vm240, %v807, -inf
        %v822 = vsel %vm240, %v811, -inf
        %v823 = vsel %vm240, %v815, -inf
        %v824 = vsel %vm240, %v819, -inf
        %v825 = vmax.f32 %v821, %v822
        %v826 = vmax.f32 %v823, %v824
        %v827 = vmax.f32 %v825, %v826
        %828 = vmax.xlane.f32.xlu0 %v827
        %v829 = vpop.xlane.xlu0 %828
        %v830 = vrot.slane %v829, 4
        %v831 = vmax.f32 %v829, %v830
        %v832 = vrot.slane %v831, 2
        %v833 = vmax.f32 %v831, %v832
        %v834 = vrot.slane %v833, 1
        %v835 = vmax.f32 %v833, %v834
        %s836 = vtos %v835
        %v837 = vsel %vm240, %v807, inf
        %v838 = vsel %vm240, %v811, inf
        %v839 = vsel %vm240, %v815, inf
        %v840 = vsel %vm240, %v819, inf
        %v841 = vmin.f32 %v837, %v838
        %v842 = vmin.f32 %v839, %v840
        %v843 = vmin.f32 %v841, %v842
        %844 = vmin.xlane.f32.xlu0 %v843
        %v845 = vpop.xlane.xlu0 %844
        %v846 = vrot.slane %v845, 4
        %v847 = vmin.f32 %v845, %v846
        %v848 = vrot.slane %v847, 2
        %v849 = vmin.f32 %v847, %v848
        %v850 = vrot.slane %v849, 1
        %v851 = vmin.f32 %v849, %v850
        %s852 = vtos %v851
        %p853 = scmp.gt.f32.partialorder %s836, 0.1
        %s854 = scalar_select %p853, 1, 0
        %s855 = scvt.s32.f32 %s854
        %s856 = ssub.f32 %s836, %s852
        %s857 = sadd.f32 %s856, 1e-09
        %v858 = vstv %s857
        %v859 = vrcp.pop %v858
        %v860 = vmul.f32 %v858, %v859
        %v861 = vsub.f32 1.0, %v860
        %v862 = vmul.f32 %v859, %v861
        %v863 = vadd.f32 %v859, %v862
        %vm864 = vweird.f32 %v858
        %vm865 = vweird.f32 %v859
        %vm866 = vmor %vm864, %vm865
        %v867 = vsel %vm866, %v859, %v863
        %v868 = vand.u32 2147483647, %v858
        %vm869 = vcmp.eq.f32.partialorder %v868, 8.507059e+37
        %v870 = vand.u32 %v858, 2147483648
        %v871 = vor.u32 1.1754944e-38, %v870
        %v872 = vsel %vm869, %v871, %v867
        %s873 = vtos %v872
        %v874 = vstv %s855
        %v875 = vmul.f32 %v807, %v874
        %v876 = vmul.f32 %v811, %v874
        %v877 = vmul.f32 %v815, %v874
        %v878 = vmul.f32 %v819, %v874
        %v879 = vstv %s852
        %v880 = vsub.f32 %v875, %v879
        %v881 = vsub.f32 %v876, %v879
        %v882 = vsub.f32 %v877, %v879
        %v883 = vsub.f32 %v878, %v879
        %v884 = vstv %s873
        %v885 = vmul.f32 %v880, %v884
        %v886 = vmul.f32 %v881, %v884
        %v887 = vmul.f32 %v882, %v884
        %v888 = vmul.f32 %v883, %v884
        %889 = vst.msk [vmem:[%s223] sm:$0xff] %vm240, %v885
        %890 = vst.msk [vmem:[%s223 + $0x8] sm:$0xff] %vm240, %v886
        %891 = vst.msk [vmem:[%s223 + $0x10] sm:$0xff] %vm240, %v887
        %892 = vst.msk [vmem:[%s223 + $0x18] sm:$0xff] %vm240, %v888
        %s893 = sand.u32 %s97, 1
        %s894 = scalar_lea.sflag [#allocation4], %s893
        %s895 = sand.u32 %s97, 1
        %s896 = smul.addr %s895, 32
        %s897 = scalar_lea.vmem [#allocation8], %s896
        // Predicated region
        $region45: #{tpu_custom_call.1} parent=31 // pred_check
          %p898 = pneg %p107
        $region46: #{tpu_custom_call.1} parent=31 // pred_check_branch
          %900 = sbr.rel (%p898) target = $region48
        $region47: #{tpu_custom_call.1} parent=31 // pred_region
          %902 = vsyncadd %s894, 0
          %s903 = smul.addr %s21, 4
          %s904 = smul.addr %s903, 8
          %s905 = scalar_lea.hbm %s3, %s904
          %s906 = sshll.u32 %s897, 4
          %s907 = int_to_ptr.vmem [resolvable:$true] %s906
          %s908 = sshll.u32 %s905, 4
          %s909 = int_to_ptr.hbm [resolvable:$true] %s908
          %914 = dma.vmem_to_hbm [thread:$0]  %s907, 512, %s909, %s894, 128, 128, 8
        $region48: #{tpu_custom_call.1} parent=31 // pred_fallthru
          _
      $region32: #{tpu_custom_call.1} parent=5 // pred_fallthru
        _
      %p915 = scmp.le.s32.totalorder 2, %s16
      // Predicated region
      $region49: #{tpu_custom_call.1} parent=5 // pred_check
        %p916 = pneg %p915
      $region50: #{tpu_custom_call.1} parent=5 // pred_check_branch
        %918 = sbr.rel (%p916) target = $region52
      $region51: #{tpu_custom_call.1} parent=5 // pred_region
        %s919 = ssub.s32 %s16, 2
        // Predicated region
        $region53: #{tpu_custom_call.1} parent=51 // pred_check
          %p920 = pneg %p113
        $region54: #{tpu_custom_call.1} parent=51 // pred_check_branch
          %922 = sbr.rel (%p920) target = $region56
        $region55: #{tpu_custom_call.1} parent=51 // pred_region
          %s923 = sand.u32 %s98, 1
          %s924 = scalar_lea.sflag [#allocation4], %s923
          %s925 = sand.u32 %s98, 1
          %s926 = smul.addr %s925, 32
          %s927 = scalar_lea.vmem [#allocation8], %s926
          %929 = dma.done %s924, 512
        $region56: #{tpu_custom_call.1} parent=51 // pred_fallthru
          _
      $region52: #{tpu_custom_call.1} parent=5 // pred_fallthru
        _
    $region6: #{tpu_custom_call.1} parent=1 // loop_footer
      %s20 = sadd.s32 1, %s16
    $region7: #{tpu_custom_call.1} parent=1 // loop_footer_branch
      %15 = sbr.rel target = $region3
    $region8: #{tpu_custom_call.1} parent=1 // loop_exit
      _
    %930 = vsyncpa [#allocation3], 1
    %s931 = scalar_lea.sflag [#allocation3], 1
    %932 = vsyncpa %s931, 1
    %933 = vsyncpa [#allocation6], 1
    %934 = vsyncpa [#allocation4], 1
    %s935 = scalar_lea.sflag [#allocation4], 1
    %936 = vsyncpa %s935, 1

</llo_original>
